<compile_context>
chip_gen: v6e
topology: v6e:2x2x1
jax: 0.10.0
libtpu: 0.0.40
codegen_flags: <defaults>
</compile_context>

<pallas_src>
import math

import jax
import jax.numpy as jnp
from jax import lax
from jax.experimental import pallas as pl
from jax.experimental.pallas import tpu as pltpu


def _gelu_exact(x):
    # F.gelu default: 0.5 * x * (1 + erf(x / sqrt(2)))  -- computed in f32.
    return 0.5 * x * (1.0 + lax.erf(x * jnp.asarray(1.0 / math.sqrt(2.0), x.dtype)))


def full_fusion_kernel(
    x_ref, a_ref,
    wx_ref,                       # (Dp, 3*Hp)  = concat([w1a, w2a, w3a], axis=1)
    w1b_ref, w2b_ref, w3b_ref,    # (Dp, Hp) each
    b123_ref,                     # (1, 3*Hp)   = concat([b1, b2, b3])
    wf_ref,                       # (3*Hp, Hp)  = concat([wfa, wfb, wfc], axis=0)
    bf_ref,                       # (1, Hp)
    o_ref,
):
    f32 = jnp.float32
    dd = wx_ref.dtype            # MXU operand dtype (bf16 by default, f32 for exact path)

    x = x_ref[...]               # kept in the streamed dtype (no wholesale upcast)
    a = a_ref[...]

    xd = x.astype(dd)
    ad = a.astype(dd)
    sd = (x - a).astype(dd)      # x - align
    md = (x * a).astype(dd)      # x * align

    # "Second operand" contributions of the three fusions, laid out side by side.
    side = jnp.concatenate(
        [
            jnp.dot(ad, w1b_ref[...], preferred_element_type=f32),
            jnp.dot(sd, w2b_ref[...], preferred_element_type=f32),
            jnp.dot(md, w3b_ref[...], preferred_element_type=f32),
        ],
        axis=-1,
    )                                                            # (tm, 3*Hp) f32

    # Single merged x-side matmul covering fusion1/2/3.
    pre = (
        jnp.dot(xd, wx_ref[...], preferred_element_type=f32)
        + side
        + b123_ref[...].astype(f32)
    )
    x123 = _gelu_exact(pre)                                      # (tm, 3*Hp) f32

    # dropout (inference mode) == identity, then one merged final matmul + GeLU.
    out = _gelu_exact(
        jnp.dot(x123.astype(dd), wf_ref[...], preferred_element_type=f32)
        + bf_ref[...].astype(f32)
    )
    o_ref[...] = out.astype(o_ref.dtype)


def init_params(key, input_size, hidden_size, dtype=jnp.float32):
    """Deterministic init matching nn.Linear shapes (stored as (fan_in, fan_out))."""
    def linear(k, fan_in, fan_out):
        kw, kb = jax.random.split(k)
        bound = 1.0 / math.sqrt(fan_in)
        w = jax.random.uniform(kw, (fan_in, fan_out), dtype, -bound, bound)
        b = jax.random.uniform(kb, (fan_out,), dtype, -bound, bound)
        return w, b

    k1, k2, k3, kf = jax.random.split(key, 4)
    w1, b1 = linear(k1, 2 * input_size, hidden_size)
    w2, b2 = linear(k2, 2 * input_size, hidden_size)
    w3, b3 = linear(k3, 2 * input_size, hidden_size)
    wf, bf = linear(kf, 3 * hidden_size, hidden_size)
    D, H = input_size, hidden_size
    return dict(
        w1a=w1[:D], w1b=w1[D:], b1=b1,
        w2a=w2[:D], w2b=w2[D:], b2=b2,
        w3a=w3[:D], w3b=w3[D:], b3=b3,
        wfa=wf[:H], wfb=wf[H:2 * H], wfc=wf[2 * H:], bf=bf,
    )


def _round_up(n, m):
    return (n + m - 1) // m * m


def full_fusion(x, align, params, *, tm=256, matmul_dtype=jnp.bfloat16):
    """Run FullFusion forward with a Pallas TPU kernel.

    matmul_dtype: dtype of the MXU operands (weights + cast activations).
      jnp.bfloat16 (default) -> ~3x MXU throughput on v6e/v7x, f32 accumulate.
      jnp.float32            -> bit-faithful to the pure-f32 reference.
    """
    B, L, D = x.shape
    H = params["b1"].shape[-1]
    M = B * L

    # Lane-dense padding of the feature dims (multiples of 128).
    Dp = _round_up(D, 128)
    Hp = _round_up(H, 128)

    # Row tile: MXU-sized by default, clamped for tiny inputs; pad M to a multiple.
    tm_eff = min(tm, _round_up(M, 8))
    Mp = _round_up(M, tm_eff)

    f32 = jnp.float32
    xf = jnp.zeros((Mp, Dp), x.dtype).at[:M, :D].set(x.reshape(M, D))
    af = jnp.zeros((Mp, Dp), align.dtype).at[:M, :D].set(align.reshape(M, D))

    def pad_w(w, rows, cols):
        return jnp.zeros((rows, cols), w.dtype).at[: w.shape[0], : w.shape[1]].set(w)

    def pad_b(b, cols):
        return jnp.zeros((1, cols), f32).at[0, : b.shape[0]].set(b.astype(f32))

    # Merged / padded weights. Weights are cast to the MXU operand dtype host-side
    # so the weight DMA + VMEM footprint is halved in the bf16 path.
    wx = jnp.concatenate(
        [pad_w(params["w1a"], Dp, Hp),
         pad_w(params["w2a"], Dp, Hp),
         pad_w(params["w3a"], Dp, Hp)], axis=1).astype(matmul_dtype)         # (Dp, 3Hp)
    w1b = pad_w(params["w1b"], Dp, Hp).astype(matmul_dtype)
    w2b = pad_w(params["w2b"], Dp, Hp).astype(matmul_dtype)
    w3b = pad_w(params["w3b"], Dp, Hp).astype(matmul_dtype)
    wf = jnp.concatenate(
        [pad_w(params["wfa"], Hp, Hp),
         pad_w(params["wfb"], Hp, Hp),
         pad_w(params["wfc"], Hp, Hp)], axis=0).astype(matmul_dtype)         # (3Hp, Hp)
    b123 = jnp.concatenate(
        [pad_b(params["b1"], Hp), pad_b(params["b2"], Hp), pad_b(params["b3"], Hp)],
        axis=1)                                                              # (1, 3Hp)
    bf = pad_b(params["bf"], Hp)                                             # (1, Hp)

    # VMEM budget: weights x2 (double-buffered by the pipeline) + streamed tiles
    # + intermediates, with headroom; clamped to stay valid on v7x (64 MiB VMEM).
    w_item = jnp.dtype(matmul_dtype).itemsize
    a_item = jnp.dtype(x.dtype).itemsize
    weight_bytes = (wx.size + w1b.size + w2b.size + w3b.size + wf.size) * w_item \
        + (b123.size + bf.size) * 4
    stream_bytes = (2 * tm_eff * Dp * a_item + tm_eff * Hp * a_item)
    interm_bytes = 4 * tm_eff * 3 * Hp * 4
    vmem_needed = 2 * weight_bytes + 2 * stream_bytes + interm_bytes + (8 << 20)
    vmem_limit = int(min(max(vmem_needed, 32 << 20), 64 << 20))

    row_spec = pl.BlockSpec((tm_eff, Dp), lambda i: (i, 0))
    wx_spec = pl.BlockSpec((Dp, 3 * Hp), lambda i: (0, 0))
    wb_spec = pl.BlockSpec((Dp, Hp), lambda i: (0, 0))
    b123_spec = pl.BlockSpec((1, 3 * Hp), lambda i: (0, 0))
    wf_spec = pl.BlockSpec((3 * Hp, Hp), lambda i: (0, 0))
    bf_spec = pl.BlockSpec((1, Hp), lambda i: (0, 0))
    out_spec = pl.BlockSpec((tm_eff, Hp), lambda i: (i, 0))

    out = pl.pallas_call(
        full_fusion_kernel,
        out_shape=jax.ShapeDtypeStruct((Mp, Hp), x.dtype),
        grid_spec=pltpu.PrefetchScalarGridSpec(
            num_scalar_prefetch=0,
            grid=(Mp // tm_eff,),
            in_specs=[
                row_spec, row_spec,
                wx_spec,
                wb_spec, wb_spec, wb_spec,
                b123_spec,
                wf_spec,
                bf_spec,
            ],
            out_specs=out_spec,
        ),
        compiler_params=pltpu.CompilerParams(
            dimension_semantics=("parallel",),
            vmem_limit_bytes=vmem_limit,
        ),
    )(xf, af, wx, w1b, w2b, w3b, b123, wf, bf)

    return out[:M, :H].reshape(B, L, H)


def full_fusion_ref(x, align, params):
    """Pure-JAX reference mirroring the PyTorch forward (eval mode, f32)."""
    def lin_gelu(a, b, wa, wb, bias):
        return jax.nn.gelu(a @ wa + b @ wb + bias, approximate=False)

    x1 = lin_gelu(x, align, params["w1a"], params["w1b"], params["b1"])
    x2 = lin_gelu(x, x - align, params["w2a"], params["w2b"], params["b2"])
    x3 = lin_gelu(x, x * align, params["w3a"], params["w3b"], params["b3"])
    pre = x1 @ params["wfa"] + x2 @ params["wfb"] + x3 @ params["wfc"] + params["bf"]
    return jax.nn.gelu(pre, approximate=False)


if __name__ == "__main__":
    B, L = 2, 8           # batch, sequence length
    input_size = 32       # feature dim of x / align
    hidden_size = 32      # Fusion hidden size

    key = jax.random.PRNGKey(0)
    kx, ka, kp = jax.random.split(key, 3)
    x = jax.random.normal(kx, (B, L, input_size), jnp.float32)
    align = jax.random.normal(ka, (B, L, input_size), jnp.float32)
    params = init_params(kp, input_size, hidden_size)

    ref = full_fusion_ref(x, align, params)

    # Exact path (f32 MXU operands) -- numerically equivalent to the PyTorch eval forward.
    out_f32 = jax.block_until_ready(full_fusion(x, align, params, matmul_dtype=jnp.float32))
    assert out_f32.shape == (B, L, hidden_size)
    assert jnp.allclose(out_f32, ref, atol=1e-5, rtol=1e-5), "f32 path mismatch vs reference"

    # Default performance path (bf16 MXU operands, f32 accumulate).
    out_bf16 = jax.block_until_ready(full_fusion(x, align, params))
    assert out_bf16.shape == (B, L, hidden_size)
    assert jnp.allclose(out_bf16, ref, atol=5e-2, rtol=5e-2), "bf16 path mismatch vs reference"

    print("KERNEL_OK")
</pallas_src>

<mosaic_0001>
module attributes {stable_mosaic.version = 11 : i64} {
  func.func @full_fusion_kernel(%arg0: i32, %arg1: memref<16x128xf32, #tpu.memory_space<vmem>>, %arg2: memref<16x128xf32, #tpu.memory_space<vmem>>, %arg3: memref<128x384xf32, #tpu.memory_space<vmem>>, %arg4: memref<128x128xf32, #tpu.memory_space<vmem>>, %arg5: memref<128x128xf32, #tpu.memory_space<vmem>>, %arg6: memref<128x128xf32, #tpu.memory_space<vmem>>, %arg7: memref<1x384xf32, #tpu.memory_space<vmem>>, %arg8: memref<384x128xf32, #tpu.memory_space<vmem>>, %arg9: memref<1x128xf32, #tpu.memory_space<vmem>>, %arg10: memref<16x128xf32, #tpu.memory_space<vmem>>) attributes {dimension_semantics = [#tpu.dimension_semantics<parallel>], iteration_bounds = array<i64: 1>, scalar_prefetch = 0 : i64, scratch_operands = 0 : i64, tpu.core_type = #tpu.core_type<tc>, window_params = [{transform_indices = @transform_0, window_bounds = array<i64: 16, 128>}, {transform_indices = @transform_1, window_bounds = array<i64: 16, 128>}, {pipeline_mode = #tpu.pipeline_mode<synchronous>, transform_indices = @transform_2, window_bounds = array<i64: 128, 384>}, {pipeline_mode = #tpu.pipeline_mode<synchronous>, transform_indices = @transform_3, window_bounds = array<i64: 128, 128>}, {pipeline_mode = #tpu.pipeline_mode<synchronous>, transform_indices = @transform_4, window_bounds = array<i64: 128, 128>}, {pipeline_mode = #tpu.pipeline_mode<synchronous>, transform_indices = @transform_5, window_bounds = array<i64: 128, 128>}, {pipeline_mode = #tpu.pipeline_mode<synchronous>, transform_indices = @transform_6, window_bounds = array<i64: 1, 384>}, {pipeline_mode = #tpu.pipeline_mode<synchronous>, transform_indices = @transform_7, window_bounds = array<i64: 384, 128>}, {pipeline_mode = #tpu.pipeline_mode<synchronous>, transform_indices = @transform_8, window_bounds = array<i64: 1, 128>}, {transform_indices = @transform_9, window_bounds = array<i64: 16, 128>}]} {
    %c0 = arith.constant 0 : index
    %c0_0 = arith.constant 0 : index
    %0 = vector.load %arg1[%c0, %c0_0] : memref<16x128xf32, #tpu.memory_space<vmem>>, vector<16x128xf32>
    %c0_1 = arith.constant 0 : index
    %c0_2 = arith.constant 0 : index
    %1 = vector.load %arg2[%c0_1, %c0_2] : memref<16x128xf32, #tpu.memory_space<vmem>>, vector<16x128xf32>
    %2 = arith.subf %0, %1 : vector<16x128xf32>
    %3 = arith.mulf %0, %1 : vector<16x128xf32>
    %c0_3 = arith.constant 0 : index
    %c0_4 = arith.constant 0 : index
    %4 = vector.load %arg4[%c0_3, %c0_4] : memref<128x128xf32, #tpu.memory_space<vmem>>, vector<128x128xf32>
    %cst = arith.constant dense<0.000000e+00> : vector<16x128xf32>
    %5 = tpu.matmul %1, %4, %cst {dimension_numbers = #tpu.dot_dimension_numbers<[1], [0], [0], [1], [0, 0, 1, 1], [], []>} : vector<16x128xf32>, vector<128x128xf32>, vector<16x128xf32> -> vector<16x128xf32>
    %c0_5 = arith.constant 0 : index
    %c0_6 = arith.constant 0 : index
    %6 = vector.load %arg5[%c0_5, %c0_6] : memref<128x128xf32, #tpu.memory_space<vmem>>, vector<128x128xf32>
    %cst_7 = arith.constant dense<0.000000e+00> : vector<16x128xf32>
    %7 = tpu.matmul %2, %6, %cst_7 {dimension_numbers = #tpu.dot_dimension_numbers<[1], [0], [0], [1], [0, 0, 1, 1], [], []>} : vector<16x128xf32>, vector<128x128xf32>, vector<16x128xf32> -> vector<16x128xf32>
    %c0_8 = arith.constant 0 : index
    %c0_9 = arith.constant 0 : index
    %8 = vector.load %arg6[%c0_8, %c0_9] : memref<128x128xf32, #tpu.memory_space<vmem>>, vector<128x128xf32>
    %cst_10 = arith.constant dense<0.000000e+00> : vector<16x128xf32>
    %9 = tpu.matmul %3, %8, %cst_10 {dimension_numbers = #tpu.dot_dimension_numbers<[1], [0], [0], [1], [0, 0, 1, 1], [], []>} : vector<16x128xf32>, vector<128x128xf32>, vector<16x128xf32> -> vector<16x128xf32>
    %10 = tpu.concatenate %5, %7, %9 in 1 : vector<16x128xf32>, vector<16x128xf32>, vector<16x128xf32> -> vector<16x384xf32>
    %c0_11 = arith.constant 0 : index
    %c0_12 = arith.constant 0 : index
    %11 = vector.load %arg3[%c0_11, %c0_12] : memref<128x384xf32, #tpu.memory_space<vmem>>, vector<128x384xf32>
    %cst_13 = arith.constant dense<0.000000e+00> : vector<16x384xf32>
    %12 = tpu.matmul %0, %11, %cst_13 {dimension_numbers = #tpu.dot_dimension_numbers<[1], [0], [0], [1], [0, 0, 1, 1], [], []>} : vector<16x128xf32>, vector<128x384xf32>, vector<16x384xf32> -> vector<16x384xf32>
    %13 = arith.addf %12, %10 : vector<16x384xf32>
    %c0_14 = arith.constant 0 : index
    %c0_15 = arith.constant 0 : index
    %14 = vector.load %arg7[%c0_14, %c0_15] : memref<1x384xf32, #tpu.memory_space<vmem>>, vector<1x384xf32>
    %15 = vector.broadcast %14 : vector<1x384xf32> to vector<16x384xf32>
    %16 = arith.addf %13, %15 : vector<16x384xf32>
    %cst_16 = arith.constant 5.000000e-01 : f32
    %17 = vector.broadcast %cst_16 : f32 to vector<16x384xf32>
    %18 = arith.mulf %17, %16 : vector<16x384xf32>
    %cst_17 = arith.constant 0.707106769 : f32
    %19 = vector.broadcast %cst_17 : f32 to vector<16x384xf32>
    %20 = arith.mulf %16, %19 : vector<16x384xf32>
    %21 = math.erf %20 : vector<16x384xf32>
    %cst_18 = arith.constant 1.000000e+00 : f32
    %22 = vector.broadcast %cst_18 : f32 to vector<16x384xf32>
    %23 = arith.addf %22, %21 : vector<16x384xf32>
    %24 = arith.mulf %18, %23 : vector<16x384xf32>
    %c0_19 = arith.constant 0 : index
    %c0_20 = arith.constant 0 : index
    %25 = vector.load %arg8[%c0_19, %c0_20] : memref<384x128xf32, #tpu.memory_space<vmem>>, vector<384x128xf32>
    %cst_21 = arith.constant dense<0.000000e+00> : vector<16x128xf32>
    %26 = tpu.matmul %24, %25, %cst_21 {dimension_numbers = #tpu.dot_dimension_numbers<[1], [0], [0], [1], [0, 0, 1, 1], [], []>} : vector<16x384xf32>, vector<384x128xf32>, vector<16x128xf32> -> vector<16x128xf32>
    %c0_22 = arith.constant 0 : index
    %c0_23 = arith.constant 0 : index
    %27 = vector.load %arg9[%c0_22, %c0_23] : memref<1x128xf32, #tpu.memory_space<vmem>>, vector<1x128xf32>
    %28 = vector.broadcast %27 : vector<1x128xf32> to vector<16x128xf32>
    %29 = arith.addf %26, %28 : vector<16x128xf32>
    %cst_24 = arith.constant 5.000000e-01 : f32
    %30 = vector.broadcast %cst_24 : f32 to vector<16x128xf32>
    %31 = arith.mulf %30, %29 : vector<16x128xf32>
    %cst_25 = arith.constant 0.707106769 : f32
    %32 = vector.broadcast %cst_25 : f32 to vector<16x128xf32>
    %33 = arith.mulf %29, %32 : vector<16x128xf32>
    %34 = math.erf %33 : vector<16x128xf32>
    %cst_26 = arith.constant 1.000000e+00 : f32
    %35 = vector.broadcast %cst_26 : f32 to vector<16x128xf32>
    %36 = arith.addf %35, %34 : vector<16x128xf32>
    %37 = arith.mulf %31, %36 : vector<16x128xf32>
    %c0_27 = arith.constant 0 : index
    %c0_28 = arith.constant 0 : index
    %38 = vector.load %arg10[%c0_27, %c0_28] : memref<16x128xf32, #tpu.memory_space<vmem>>, vector<16x128xf32>
    tpu.vector_store %arg10[%c0_27, %c0_28], %37 {strides = array<i32>} : memref<16x128xf32, #tpu.memory_space<vmem>>, vector<16x128xf32>,
    return
  }
  func.func @transform_0(%arg0: i32) -> (i32, i32) {
    %c0_i32 = arith.constant 0 : i32
    %c0_i32_0 = arith.constant 0 : i32
    return %arg0, %c0_i32 : i32, i32
  }
  func.func @transform_1(%arg0: i32) -> (i32, i32) {
    %c0_i32 = arith.constant 0 : i32
    %c0_i32_0 = arith.constant 0 : i32
    return %arg0, %c0_i32 : i32, i32
  }
  func.func @transform_2(%arg0: i32) -> (i32, i32) {
    %c0_i32 = arith.constant 0 : i32
    %c0_i32_0 = arith.constant 0 : i32
    %c0_i32_1 = arith.constant 0 : i32
    return %c0_i32, %c0_i32_0 : i32, i32
  }
  func.func @transform_3(%arg0: i32) -> (i32, i32) {
    %c0_i32 = arith.constant 0 : i32
    %c0_i32_0 = arith.constant 0 : i32
    %c0_i32_1 = arith.constant 0 : i32
    return %c0_i32, %c0_i32_0 : i32, i32
  }
  func.func @transform_4(%arg0: i32) -> (i32, i32) {
    %c0_i32 = arith.constant 0 : i32
    %c0_i32_0 = arith.constant 0 : i32
    %c0_i32_1 = arith.constant 0 : i32
    return %c0_i32, %c0_i32_0 : i32, i32
  }
  func.func @transform_5(%arg0: i32) -> (i32, i32) {
    %c0_i32 = arith.constant 0 : i32
    %c0_i32_0 = arith.constant 0 : i32
    %c0_i32_1 = arith.constant 0 : i32
    return %c0_i32, %c0_i32_0 : i32, i32
  }
  func.func @transform_6(%arg0: i32) -> (i32, i32) {
    %c0_i32 = arith.constant 0 : i32
    %c0_i32_0 = arith.constant 0 : i32
    %c0_i32_1 = arith.constant 0 : i32
    return %c0_i32, %c0_i32_0 : i32, i32
  }
  func.func @transform_7(%arg0: i32) -> (i32, i32) {
    %c0_i32 = arith.constant 0 : i32
    %c0_i32_0 = arith.constant 0 : i32
    %c0_i32_1 = arith.constant 0 : i32
    return %c0_i32, %c0_i32_0 : i32, i32
  }
  func.func @transform_8(%arg0: i32) -> (i32, i32) {
    %c0_i32 = arith.constant 0 : i32
    %c0_i32_0 = arith.constant 0 : i32
    %c0_i32_1 = arith.constant 0 : i32
    return %c0_i32, %c0_i32_0 : i32, i32
  }
  func.func @transform_9(%arg0: i32) -> (i32, i32) {
    %c0_i32 = arith.constant 0 : i32
    %c0_i32_0 = arith.constant 0 : i32
    return %arg0, %c0_i32 : i32, i32
  }
}

</mosaic_0001>

<llo_original>
// kernel: tpu_custom_call.1
$region0: #{tpu_custom_call.1}
  #allocation0 [shape = 'u32[]', space=smem, size = 0x4, offset = 0x4, fixed_abs, tag = 'smem constant byte address 0x4 - core index']
  #allocation1 [shape = 'u32[144,128]{1,0:T(1,128)}', space=vmem, size = 0x12000, scoped, tag = 'internal scratch']
  %s0 = inlined_call_operand.hbm [shape: f32[16,128], index: 0, kind: input, shape index: {}]
  %s1 = inlined_call_operand.hbm [shape: f32[16,128], index: 1, kind: input, shape index: {}]
  %s2 = inlined_call_operand.hbm [shape: f32[128,384], index: 2, kind: input, shape index: {}]
  %s3 = inlined_call_operand.hbm [shape: f32[128,128], index: 3, kind: input, shape index: {}]
  %s4 = inlined_call_operand.hbm [shape: f32[128,128], index: 4, kind: input, shape index: {}]
  %s5 = inlined_call_operand.hbm [shape: f32[128,128], index: 5, kind: input, shape index: {}]
  %s6 = inlined_call_operand.vmem [shape: f32[1,384], index: 6, kind: input, shape index: {}]
  %s7 = inlined_call_operand.hbm [shape: f32[384,128], index: 7, kind: input, shape index: {}]
  %s8 = inlined_call_operand.vmem [shape: f32[1,128], index: 8, kind: input, shape index: {}]
  %s9 = inlined_call_operand.hbm [shape: f32[16,128], index: 9, kind: output, shape index: {}]
  %s10 = sld [smem:[#allocation0]]
  $region74: #{tpu_custom_call.1} parent=0
    _
  %s12 = ssub.s32 1, %s10
  %s13 = scalar_select 0, %s12, %s10
  $region1: #{tpu_custom_call.1} parent=0
    #allocation2 [shape = 'u8[8192]{0}', space=vmem, size = 0x2000, scoped, tag = 'input window, operand 0, single buffered']
    #allocation3 [shape = 's32[1]{0}', space=sflag, size = 0x4, scoped, tag = 'scoped memory for tpu_custom_call.1']
    #allocation4 [shape = 's32[1]{0}', space=sflag, size = 0x4, scoped, tag = 'scoped memory for tpu_custom_call.1']
    #allocation5 [shape = 'u8[8192]{0}', space=vmem, size = 0x2000, scoped, tag = 'input window, operand 1, single buffered']
    #allocation6 [shape = 's32[1]{0}', space=sflag, size = 0x4, scoped, tag = 'scoped memory for tpu_custom_call.1']
    #allocation7 [shape = 'u8[196608]{0}', space=vmem, size = 0x30000, scoped, tag = 'input window, operand 2, single buffered']
    #allocation8 [shape = 'u8[65536]{0}', space=vmem, size = 0x10000, scoped, tag = 'input window, operand 3, single buffered']
    #allocation9 [shape = 's32[1]{0}', space=sflag, size = 0x4, scoped, tag = 'scoped memory for tpu_custom_call.1']
    #allocation10 [shape = 'u8[65536]{0}', space=vmem, size = 0x10000, scoped, tag = 'input window, operand 4, single buffered']
    #allocation11 [shape = 'u8[65536]{0}', space=vmem, size = 0x10000, scoped, tag = 'input window, operand 5, single buffered']
    #allocation12 [shape = 's32[1]{0}', space=sflag, size = 0x4, scoped, tag = 'scoped memory for tpu_custom_call.1']
    #allocation13 [shape = 'u8[196608]{0}', space=vmem, size = 0x30000, scoped, tag = 'input window, operand 7, single buffered']
    #allocation14 [shape = 'u8[8192]{0}', space=vmem, size = 0x2000, scoped, tag = 'output window, operand 0, single buffered']
    %14 = vsyncpa [#allocation3], 0
    %15 = vsyncpa [#allocation6], 0
    %16 = vsyncpa [#allocation9], 0
    %17 = vsyncpa [#allocation12], 0
    %18 = vsyncpa [#allocation4], 0
    // Predicated region
    $region2: #{tpu_custom_call.1} parent=1 // pred_check
      _
    $region3: #{tpu_custom_call.1} parent=1 // pred_check_branch
      %20 = sbr.rel (0) target = $region5
    $region4: #{tpu_custom_call.1} parent=1 // pred_region
      %s22 = ssub.s32 256, 256
      %23 = vsyncadd [#allocation3], %s22
      %s24 = sshll.u32 [#allocation2], 4
      %s25 = int_to_ptr.vmem [resolvable:$true] %s24
      %30 = dma.hbm_to_vmem [thread:$0]  %s0, 256, %s25, [#allocation3], 128, 128, 8
    $region5: #{tpu_custom_call.1} parent=1 // pred_fallthru
      _
    // Predicated region
    $region6: #{tpu_custom_call.1} parent=1 // pred_check
      _
    $region7: #{tpu_custom_call.1} parent=1 // pred_check_branch
      %32 = sbr.rel (0) target = $region9
    $region8: #{tpu_custom_call.1} parent=1 // pred_region
      %s34 = ssub.s32 256, 256
      %35 = vsyncadd [#allocation6], %s34
      %s36 = sshll.u32 [#allocation5], 4
      %s37 = int_to_ptr.vmem [resolvable:$true] %s36
      %42 = dma.hbm_to_vmem [thread:$0]  %s1, 256, %s37, [#allocation6], 128, 128, 8
    $region9: #{tpu_custom_call.1} parent=1 // pred_fallthru
      _
    // Predicated region
    $region10: #{tpu_custom_call.1} parent=1 // pred_check
      _
    $region11: #{tpu_custom_call.1} parent=1 // pred_check_branch
      %44 = sbr.rel (0) target = $region13
    $region12: #{tpu_custom_call.1} parent=1 // pred_region
      %s46 = ssub.s32 6144, 6144
      %47 = vsyncadd [#allocation6], %s46
      %s48 = sshll.u32 [#allocation7], 4
      %s49 = int_to_ptr.vmem [resolvable:$true] %s48
      %54 = dma.hbm_to_vmem [thread:$0]  %s2, 6144, %s49, [#allocation6], 384, 384, 24
    $region13: #{tpu_custom_call.1} parent=1 // pred_fallthru
      _
    // Predicated region
    $region14: #{tpu_custom_call.1} parent=1 // pred_check
      _
    $region15: #{tpu_custom_call.1} parent=1 // pred_check_branch
      %56 = sbr.rel (0) target = $region17
    $region16: #{tpu_custom_call.1} parent=1 // pred_region
      %s58 = ssub.s32 2048, 2048
      %59 = vsyncadd [#allocation9], %s58
      %s60 = sshll.u32 [#allocation8], 4
      %s61 = int_to_ptr.vmem [resolvable:$true] %s60
      %66 = dma.hbm_to_vmem [thread:$0]  %s3, 2048, %s61, [#allocation9], 128, 128, 8
    $region17: #{tpu_custom_call.1} parent=1 // pred_fallthru
      _
    // Predicated region
    $region18: #{tpu_custom_call.1} parent=1 // pred_check
      _
    $region19: #{tpu_custom_call.1} parent=1 // pred_check_branch
      %68 = sbr.rel (0) target = $region21
    $region20: #{tpu_custom_call.1} parent=1 // pred_region
      %s70 = ssub.s32 2048, 2048
      %71 = vsyncadd [#allocation9], %s70
      %s72 = sshll.u32 [#allocation10], 4
      %s73 = int_to_ptr.vmem [resolvable:$true] %s72
      %78 = dma.hbm_to_vmem [thread:$0]  %s4, 2048, %s73, [#allocation9], 128, 128, 8
    $region21: #{tpu_custom_call.1} parent=1 // pred_fallthru
      _
    // Predicated region
    $region22: #{tpu_custom_call.1} parent=1 // pred_check
      _
    $region23: #{tpu_custom_call.1} parent=1 // pred_check_branch
      %80 = sbr.rel (0) target = $region25
    $region24: #{tpu_custom_call.1} parent=1 // pred_region
      %s82 = ssub.s32 2048, 2048
      %83 = vsyncadd [#allocation12], %s82
      %s84 = sshll.u32 [#allocation11], 4
      %s85 = int_to_ptr.vmem [resolvable:$true] %s84
      %90 = dma.hbm_to_vmem [thread:$0]  %s5, 2048, %s85, [#allocation12], 128, 128, 8
    $region25: #{tpu_custom_call.1} parent=1 // pred_fallthru
      _
    // Predicated region
    $region26: #{tpu_custom_call.1} parent=1 // pred_check
      _
    $region27: #{tpu_custom_call.1} parent=1 // pred_check_branch
      %92 = sbr.rel (0) target = $region29
    $region28: #{tpu_custom_call.1} parent=1 // pred_region
      _
    $region29: #{tpu_custom_call.1} parent=1 // pred_fallthru
      _
    // Predicated region
    $region30: #{tpu_custom_call.1} parent=1 // pred_check
      _
    $region31: #{tpu_custom_call.1} parent=1 // pred_check_branch
      %94 = sbr.rel (0) target = $region33
    $region32: #{tpu_custom_call.1} parent=1 // pred_region
      %s96 = ssub.s32 6144, 6144
      %97 = vsyncadd [#allocation12], %s96
      %s98 = sshll.u32 [#allocation13], 4
      %s99 = int_to_ptr.vmem [resolvable:$true] %s98
      %104 = dma.hbm_to_vmem [thread:$0]  %s7, 6144, %s99, [#allocation12], 128, 128, 8
    $region33: #{tpu_custom_call.1} parent=1 // pred_fallthru
      _
    // Predicated region
    $region34: #{tpu_custom_call.1} parent=1 // pred_check
      _
    $region35: #{tpu_custom_call.1} parent=1 // pred_check_branch
      %106 = sbr.rel (0) target = $region37
    $region36: #{tpu_custom_call.1} parent=1 // pred_region
      _
    $region37: #{tpu_custom_call.1} parent=1 // pred_fallthru
      _
    // Predicated region
    $region38: #{tpu_custom_call.1} parent=1 // pred_check
      _
    $region39: #{tpu_custom_call.1} parent=1 // pred_check_branch
      %108 = sbr.rel (0) target = $region41
    $region40: #{tpu_custom_call.1} parent=1 // pred_region
      %109 = dma.done [#allocation3], 256
    $region41: #{tpu_custom_call.1} parent=1 // pred_fallthru
      _
    // Predicated region
    $region42: #{tpu_custom_call.1} parent=1 // pred_check
      _
    $region43: #{tpu_custom_call.1} parent=1 // pred_check_branch
      %111 = sbr.rel (0) target = $region45
    $region44: #{tpu_custom_call.1} parent=1 // pred_region
      %112 = dma.done [#allocation6], 256
    $region45: #{tpu_custom_call.1} parent=1 // pred_fallthru
      _
    // Predicated region
    $region46: #{tpu_custom_call.1} parent=1 // pred_check
      _
    $region47: #{tpu_custom_call.1} parent=1 // pred_check_branch
      %114 = sbr.rel (0) target = $region49
    $region48: #{tpu_custom_call.1} parent=1 // pred_region
      %115 = dma.done [#allocation6], 6144
    $region49: #{tpu_custom_call.1} parent=1 // pred_fallthru
      _
    // Predicated region
    $region50: #{tpu_custom_call.1} parent=1 // pred_check
      _
    $region51: #{tpu_custom_call.1} parent=1 // pred_check_branch
      %117 = sbr.rel (0) target = $region53
    $region52: #{tpu_custom_call.1} parent=1 // pred_region
      %118 = dma.done [#allocation9], 2048
    $region53: #{tpu_custom_call.1} parent=1 // pred_fallthru
      _
    // Predicated region
    $region54: #{tpu_custom_call.1} parent=1 // pred_check
      _
    $region55: #{tpu_custom_call.1} parent=1 // pred_check_branch
      %120 = sbr.rel (0) target = $region57
    $region56: #{tpu_custom_call.1} parent=1 // pred_region
      %121 = dma.done [#allocation9], 2048
    $region57: #{tpu_custom_call.1} parent=1 // pred_fallthru
      _
    // Predicated region
    $region58: #{tpu_custom_call.1} parent=1 // pred_check
      _
    $region59: #{tpu_custom_call.1} parent=1 // pred_check_branch
      %123 = sbr.rel (0) target = $region61
    $region60: #{tpu_custom_call.1} parent=1 // pred_region
      %124 = dma.done [#allocation12], 2048
    $region61: #{tpu_custom_call.1} parent=1 // pred_fallthru
      _
    // Predicated region
    $region62: #{tpu_custom_call.1} parent=1 // pred_check
      _
    $region63: #{tpu_custom_call.1} parent=1 // pred_check_branch
      %126 = sbr.rel (0) target = $region65
    $region64: #{tpu_custom_call.1} parent=1 // pred_region
      %127 = dma.done [#allocation12], 6144
    $region65: #{tpu_custom_call.1} parent=1 // pred_fallthru
      _
    %v128 = vld [vmem:[#allocation2] sm:$0xff]
    %v129 = vld [vmem:[#allocation2 + $0x8] sm:$0xff]
    %v130 = vld [vmem:[#allocation5] sm:$0xff]
    %v131 = vld [vmem:[#allocation5 + $0x8] sm:$0xff]
    %v132 = vsub.f32 %v128, %v130
    %v133 = vsub.f32 %v129, %v131
    %v134 = vmul.f32 %v128, %v130
    %v135 = vmul.f32 %v129, %v131
    %v136 = vld [vmem:[#allocation8] sm:$0xff]
    %v137 = vld [vmem:[#allocation8 + $0x8] sm:$0xff]
    %v138 = vld [vmem:[#allocation8 + $0x10] sm:$0xff]
    %v139 = vld [vmem:[#allocation8 + $0x18] sm:$0xff]
    %v140 = vld [vmem:[#allocation8 + $0x20] sm:$0xff]
    %v141 = vld [vmem:[#allocation8 + $0x28] sm:$0xff]
    %v142 = vld [vmem:[#allocation8 + $0x30] sm:$0xff]
    %v143 = vld [vmem:[#allocation8 + $0x38] sm:$0xff]
    %v144 = vld [vmem:[#allocation8 + $0x40] sm:$0xff]
    %v145 = vld [vmem:[#allocation8 + $0x48] sm:$0xff]
    %v146 = vld [vmem:[#allocation8 + $0x50] sm:$0xff]
    %v147 = vld [vmem:[#allocation8 + $0x58] sm:$0xff]
    %v148 = vld [vmem:[#allocation8 + $0x60] sm:$0xff]
    %v149 = vld [vmem:[#allocation8 + $0x68] sm:$0xff]
    %v150 = vld [vmem:[#allocation8 + $0x70] sm:$0xff]
    %v151 = vld [vmem:[#allocation8 + $0x78] sm:$0xff]
    %152 = vmatprep.subr.mxu0 0.0
    %153 = vmatpush1.msra.mxu0 %v151
    %154 = vmatprep.subr.mxu0 0.0
    %155 = vmatpush1.msra.mxu0 %v150
    %156 = vmatprep.subr.mxu0 0.0
    %157 = vmatpush1.msra.mxu0 %v149
    %158 = vmatprep.subr.mxu0 0.0
    %159 = vmatpush1.msra.mxu0 %v148
    %160 = vmatprep.subr.mxu0 0.0
    %161 = vmatpush1.msra.mxu0 %v147
    %162 = vmatprep.subr.mxu0 0.0
    %163 = vmatpush1.msra.mxu0 %v146
    %164 = vmatprep.subr.mxu0 0.0
    %165 = vmatpush1.msra.mxu0 %v145
    %166 = vmatprep.subr.mxu0 0.0
    %167 = vmatpush1.msra.mxu0 %v144
    %168 = vmatprep.subr.mxu0 0.0
    %169 = vmatpush1.msra.mxu0 %v143
    %170 = vmatprep.subr.mxu0 0.0
    %171 = vmatpush1.msra.mxu0 %v142
    %172 = vmatprep.subr.mxu0 0.0
    %173 = vmatpush1.msra.mxu0 %v141
    %174 = vmatprep.subr.mxu0 0.0
    %175 = vmatpush1.msra.mxu0 %v140
    %176 = vmatprep.subr.mxu0 0.0
    %177 = vmatpush1.msra.mxu0 %v139
    %178 = vmatprep.subr.mxu0 0.0
    %179 = vmatpush1.msra.mxu0 %v138
    %180 = vmatprep.subr.mxu0 0.0
    %181 = vmatpush1.msra.mxu0 %v137
    %182 = vmatprep.subr.mxu0 0.0
    %183 = vmatpush1.msra.mxu0 %v136
    %184 = vmatprep.subr.mxu0 0.0
    %185 = vmatpush2.msra.mxu0 0.0
    %186 = vmatprep.subr.mxu0 0.0
    %187 = vmatpush2.msra.mxu0 0.0
    %188 = vmatprep.subr.mxu0 0.0
    %189 = vmatpush2.msra.mxu0 0.0
    %190 = vmatprep.subr.mxu0 0.0
    %191 = vmatpush2.msra.mxu0 0.0
    %192 = vmatprep.subr.mxu0 0.0
    %193 = vmatpush2.msra.mxu0 0.0
    %194 = vmatprep.subr.mxu0 0.0
    %195 = vmatpush2.msra.mxu0 0.0
    %196 = vmatprep.subr.mxu0 0.0
    %197 = vmatpush2.msra.mxu0 0.0
    %198 = vmatprep.subr.mxu0 0.0
    %199 = vmatpush2.msra.mxu0 0.0
    %200 = vmatprep.subr.mxu0 0.0
    %201 = vmatpush2.msra.mxu0 0.0
    %202 = vmatprep.subr.mxu0 0.0
    %203 = vmatpush2.msra.mxu0 0.0
    %204 = vmatprep.subr.mxu0 0.0
    %205 = vmatpush2.msra.mxu0 0.0
    %206 = vmatprep.subr.mxu0 0.0
    %207 = vmatpush2.msra.mxu0 0.0
    %208 = vmatprep.subr.mxu0 0.0
    %209 = vmatpush2.msra.mxu0 0.0
    %210 = vmatprep.subr.mxu0 0.0
    %211 = vmatpush2.msra.mxu0 0.0
    %212 = vmatprep.subr.mxu0 0.0
    %213 = vmatpush2.msra.mxu0 0.0
    %214 = vmatprep.subr.mxu0 0.0
    %215 = vmatpush2.msra.mxu0 0.0
    %216 = vmatprep.mubr.f32.mxu0 0.0
    %217 = vmatmul.mubr.f32.gmra.mxu0 %v130
    %v218 = vpop.f32.mrf.mxu0
    %v219 = vadd.f32 0.0, %v218
    %v220 = vpop.f32.mrf.mxu0
    %221 = vmatprep.mubr.f32.mxu0 0.0
    %222 = vmatmul.mubr.f32.gmra.mxu0 %v131
    %v223 = vpop.f32.mrf.mxu0
    %v224 = vadd.f32 0.0, %v223
    %v225 = vpop.f32.mrf.mxu0
    %226 = vdwg.mxu0
    %v227 = vld [vmem:[#allocation10] sm:$0xff]
    %v228 = vld [vmem:[#allocation10 + $0x8] sm:$0xff]
    %v229 = vld [vmem:[#allocation10 + $0x10] sm:$0xff]
    %v230 = vld [vmem:[#allocation10 + $0x18] sm:$0xff]
    %v231 = vld [vmem:[#allocation10 + $0x20] sm:$0xff]
    %v232 = vld [vmem:[#allocation10 + $0x28] sm:$0xff]
    %v233 = vld [vmem:[#allocation10 + $0x30] sm:$0xff]
    %v234 = vld [vmem:[#allocation10 + $0x38] sm:$0xff]
    %v235 = vld [vmem:[#allocation10 + $0x40] sm:$0xff]
    %v236 = vld [vmem:[#allocation10 + $0x48] sm:$0xff]
    %v237 = vld [vmem:[#allocation10 + $0x50] sm:$0xff]
    %v238 = vld [vmem:[#allocation10 + $0x58] sm:$0xff]
    %v239 = vld [vmem:[#allocation10 + $0x60] sm:$0xff]
    %v240 = vld [vmem:[#allocation10 + $0x68] sm:$0xff]
    %v241 = vld [vmem:[#allocation10 + $0x70] sm:$0xff]
    %v242 = vld [vmem:[#allocation10 + $0x78] sm:$0xff]
    %243 = vmatprep.subr.mxu0 0.0
    %244 = vmatpush1.msra.mxu0 %v242
    %245 = vmatprep.subr.mxu0 0.0
    %246 = vmatpush1.msra.mxu0 %v241
    %247 = vmatprep.subr.mxu0 0.0
    %248 = vmatpush1.msra.mxu0 %v240
    %249 = vmatprep.subr.mxu0 0.0
    %250 = vmatpush1.msra.mxu0 %v239
    %251 = vmatprep.subr.mxu0 0.0
    %252 = vmatpush1.msra.mxu0 %v238
    %253 = vmatprep.subr.mxu0 0.0
    %254 = vmatpush1.msra.mxu0 %v237
    %255 = vmatprep.subr.mxu0 0.0
    %256 = vmatpush1.msra.mxu0 %v236
    %257 = vmatprep.subr.mxu0 0.0
    %258 = vmatpush1.msra.mxu0 %v235
    %259 = vmatprep.subr.mxu0 0.0
    %260 = vmatpush1.msra.mxu0 %v234
    %261 = vmatprep.subr.mxu0 0.0
    %262 = vmatpush1.msra.mxu0 %v233
    %263 = vmatprep.subr.mxu0 0.0
    %264 = vmatpush1.msra.mxu0 %v232
    %265 = vmatprep.subr.mxu0 0.0
    %266 = vmatpush1.msra.mxu0 %v231
    %267 = vmatprep.subr.mxu0 0.0
    %268 = vmatpush1.msra.mxu0 %v230
    %269 = vmatprep.subr.mxu0 0.0
    %270 = vmatpush1.msra.mxu0 %v229
    %271 = vmatprep.subr.mxu0 0.0
    %272 = vmatpush1.msra.mxu0 %v228
    %273 = vmatprep.subr.mxu0 0.0
    %274 = vmatpush1.msra.mxu0 %v227
    %275 = vmatprep.subr.mxu0 0.0
    %276 = vmatpush2.msra.mxu0 0.0
    %277 = vmatprep.subr.mxu0 0.0
    %278 = vmatpush2.msra.mxu0 0.0
    %279 = vmatprep.subr.mxu0 0.0
    %280 = vmatpush2.msra.mxu0 0.0
    %281 = vmatprep.subr.mxu0 0.0
    %282 = vmatpush2.msra.mxu0 0.0
    %283 = vmatprep.subr.mxu0 0.0
    %284 = vmatpush2.msra.mxu0 0.0
    %285 = vmatprep.subr.mxu0 0.0
    %286 = vmatpush2.msra.mxu0 0.0
    %287 = vmatprep.subr.mxu0 0.0
    %288 = vmatpush2.msra.mxu0 0.0
    %289 = vmatprep.subr.mxu0 0.0
    %290 = vmatpush2.msra.mxu0 0.0
    %291 = vmatprep.subr.mxu0 0.0
    %292 = vmatpush2.msra.mxu0 0.0
    %293 = vmatprep.subr.mxu0 0.0
    %294 = vmatpush2.msra.mxu0 0.0
    %295 = vmatprep.subr.mxu0 0.0
    %296 = vmatpush2.msra.mxu0 0.0
    %297 = vmatprep.subr.mxu0 0.0
    %298 = vmatpush2.msra.mxu0 0.0
    %299 = vmatprep.subr.mxu0 0.0
    %300 = vmatpush2.msra.mxu0 0.0
    %301 = vmatprep.subr.mxu0 0.0
    %302 = vmatpush2.msra.mxu0 0.0
    %303 = vmatprep.subr.mxu0 0.0
    %304 = vmatpush2.msra.mxu0 0.0
    %305 = vmatprep.subr.mxu0 0.0
    %306 = vmatpush2.msra.mxu0 0.0
    %307 = vmatprep.mubr.f32.mxu0 0.0
    %308 = vmatmul.mubr.f32.gmra.mxu0 %v132
    %v309 = vpop.f32.mrf.mxu0
    %v310 = vadd.f32 0.0, %v309
    %v311 = vpop.f32.mrf.mxu0
    %312 = vmatprep.mubr.f32.mxu0 0.0
    %313 = vmatmul.mubr.f32.gmra.mxu0 %v133
    %v314 = vpop.f32.mrf.mxu0
    %v315 = vadd.f32 0.0, %v314
    %v316 = vpop.f32.mrf.mxu0
    %317 = vdwg.mxu0
    %v318 = vld [vmem:[#allocation11] sm:$0xff]
    %v319 = vld [vmem:[#allocation11 + $0x8] sm:$0xff]
    %v320 = vld [vmem:[#allocation11 + $0x10] sm:$0xff]
    %v321 = vld [vmem:[#allocation11 + $0x18] sm:$0xff]
    %v322 = vld [vmem:[#allocation11 + $0x20] sm:$0xff]
    %v323 = vld [vmem:[#allocation11 + $0x28] sm:$0xff]
    %v324 = vld [vmem:[#allocation11 + $0x30] sm:$0xff]
    %v325 = vld [vmem:[#allocation11 + $0x38] sm:$0xff]
    %v326 = vld [vmem:[#allocation11 + $0x40] sm:$0xff]
    %v327 = vld [vmem:[#allocation11 + $0x48] sm:$0xff]
    %v328 = vld [vmem:[#allocation11 + $0x50] sm:$0xff]
    %v329 = vld [vmem:[#allocation11 + $0x58] sm:$0xff]
    %v330 = vld [vmem:[#allocation11 + $0x60] sm:$0xff]
    %v331 = vld [vmem:[#allocation11 + $0x68] sm:$0xff]
    %v332 = vld [vmem:[#allocation11 + $0x70] sm:$0xff]
    %v333 = vld [vmem:[#allocation11 + $0x78] sm:$0xff]
    %334 = vmatprep.subr.mxu0 0.0
    %335 = vmatpush1.msra.mxu0 %v333
    %336 = vmatprep.subr.mxu0 0.0
    %337 = vmatpush1.msra.mxu0 %v332
    %338 = vmatprep.subr.mxu0 0.0
    %339 = vmatpush1.msra.mxu0 %v331
    %340 = vmatprep.subr.mxu0 0.0
    %341 = vmatpush1.msra.mxu0 %v330
    %342 = vmatprep.subr.mxu0 0.0
    %343 = vmatpush1.msra.mxu0 %v329
    %344 = vmatprep.subr.mxu0 0.0
    %345 = vmatpush1.msra.mxu0 %v328
    %346 = vmatprep.subr.mxu0 0.0
    %347 = vmatpush1.msra.mxu0 %v327
    %348 = vmatprep.subr.mxu0 0.0
    %349 = vmatpush1.msra.mxu0 %v326
    %350 = vmatprep.subr.mxu0 0.0
    %351 = vmatpush1.msra.mxu0 %v325
    %352 = vmatprep.subr.mxu0 0.0
    %353 = vmatpush1.msra.mxu0 %v324
    %354 = vmatprep.subr.mxu0 0.0
    %355 = vmatpush1.msra.mxu0 %v323
    %356 = vmatprep.subr.mxu0 0.0
    %357 = vmatpush1.msra.mxu0 %v322
    %358 = vmatprep.subr.mxu0 0.0
    %359 = vmatpush1.msra.mxu0 %v321
    %360 = vmatprep.subr.mxu0 0.0
    %361 = vmatpush1.msra.mxu0 %v320
    %362 = vmatprep.subr.mxu0 0.0
    %363 = vmatpush1.msra.mxu0 %v319
    %364 = vmatprep.subr.mxu0 0.0
    %365 = vmatpush1.msra.mxu0 %v318
    %366 = vmatprep.subr.mxu0 0.0
    %367 = vmatpush2.msra.mxu0 0.0
    %368 = vmatprep.subr.mxu0 0.0
    %369 = vmatpush2.msra.mxu0 0.0
    %370 = vmatprep.subr.mxu0 0.0
    %371 = vmatpush2.msra.mxu0 0.0
    %372 = vmatprep.subr.mxu0 0.0
    %373 = vmatpush2.msra.mxu0 0.0
    %374 = vmatprep.subr.mxu0 0.0
    %375 = vmatpush2.msra.mxu0 0.0
    %376 = vmatprep.subr.mxu0 0.0
    %377 = vmatpush2.msra.mxu0 0.0
    %378 = vmatprep.subr.mxu0 0.0
    %379 = vmatpush2.msra.mxu0 0.0
    %380 = vmatprep.subr.mxu0 0.0
    %381 = vmatpush2.msra.mxu0 0.0
    %382 = vmatprep.subr.mxu0 0.0
    %383 = vmatpush2.msra.mxu0 0.0
    %384 = vmatprep.subr.mxu0 0.0
    %385 = vmatpush2.msra.mxu0 0.0
    %386 = vmatprep.subr.mxu0 0.0
    %387 = vmatpush2.msra.mxu0 0.0
    %388 = vmatprep.subr.mxu0 0.0
    %389 = vmatpush2.msra.mxu0 0.0
    %390 = vmatprep.subr.mxu0 0.0
    %391 = vmatpush2.msra.mxu0 0.0
    %392 = vmatprep.subr.mxu0 0.0
    %393 = vmatpush2.msra.mxu0 0.0
    %394 = vmatprep.subr.mxu0 0.0
    %395 = vmatpush2.msra.mxu0 0.0
    %396 = vmatprep.subr.mxu0 0.0
    %397 = vmatpush2.msra.mxu0 0.0
    %398 = vmatprep.mubr.f32.mxu0 0.0
    %399 = vmatmul.mubr.f32.gmra.mxu0 %v134
    %v400 = vpop.f32.mrf.mxu0
    %v401 = vadd.f32 0.0, %v400
    %v402 = vpop.f32.mrf.mxu0
    %403 = vmatprep.mubr.f32.mxu0 0.0
    %404 = vmatmul.mubr.f32.gmra.mxu0 %v135
    %v405 = vpop.f32.mrf.mxu0
    %v406 = vadd.f32 0.0, %v405
    %v407 = vpop.f32.mrf.mxu0
    %408 = vdwg.mxu0
    %v409 = vld [vmem:[#allocation7] sm:$0xff]
    %v410 = vld [vmem:[#allocation7 + $0x8] sm:$0xff]
    %v411 = vld [vmem:[#allocation7 + $0x10] sm:$0xff]
    %v412 = vld [vmem:[#allocation7 + $0x18] sm:$0xff]
    %v413 = vld [vmem:[#allocation7 + $0x20] sm:$0xff]
    %v414 = vld [vmem:[#allocation7 + $0x28] sm:$0xff]
    %v415 = vld [vmem:[#allocation7 + $0x30] sm:$0xff]
    %v416 = vld [vmem:[#allocation7 + $0x38] sm:$0xff]
    %v417 = vld [vmem:[#allocation7 + $0x40] sm:$0xff]
    %v418 = vld [vmem:[#allocation7 + $0x48] sm:$0xff]
    %v419 = vld [vmem:[#allocation7 + $0x50] sm:$0xff]
    %v420 = vld [vmem:[#allocation7 + $0x58] sm:$0xff]
    %v421 = vld [vmem:[#allocation7 + $0x60] sm:$0xff]
    %v422 = vld [vmem:[#allocation7 + $0x68] sm:$0xff]
    %v423 = vld [vmem:[#allocation7 + $0x70] sm:$0xff]
    %v424 = vld [vmem:[#allocation7 + $0x78] sm:$0xff]
    %v425 = vld [vmem:[#allocation7 + $0x80] sm:$0xff]
    %v426 = vld [vmem:[#allocation7 + $0x88] sm:$0xff]
    %v427 = vld [vmem:[#allocation7 + $0x90] sm:$0xff]
    %v428 = vld [vmem:[#allocation7 + $0x98] sm:$0xff]
    %v429 = vld [vmem:[#allocation7 + $0xa0] sm:$0xff]
    %v430 = vld [vmem:[#allocation7 + $0xa8] sm:$0xff]
    %v431 = vld [vmem:[#allocation7 + $0xb0] sm:$0xff]
    %v432 = vld [vmem:[#allocation7 + $0xb8] sm:$0xff]
    %v433 = vld [vmem:[#allocation7 + $0xc0] sm:$0xff]
    %v434 = vld [vmem:[#allocation7 + $0xc8] sm:$0xff]
    %v435 = vld [vmem:[#allocation7 + $0xd0] sm:$0xff]
    %v436 = vld [vmem:[#allocation7 + $0xd8] sm:$0xff]
    %v437 = vld [vmem:[#allocation7 + $0xe0] sm:$0xff]
    %v438 = vld [vmem:[#allocation7 + $0xe8] sm:$0xff]
    %v439 = vld [vmem:[#allocation7 + $0xf0] sm:$0xff]
    %v440 = vld [vmem:[#allocation7 + $0xf8] sm:$0xff]
    %v441 = vld [vmem:[#allocation7 + $0x100] sm:$0xff]
    %v442 = vld [vmem:[#allocation7 + $0x108] sm:$0xff]
    %v443 = vld [vmem:[#allocation7 + $0x110] sm:$0xff]
    %v444 = vld [vmem:[#allocation7 + $0x118] sm:$0xff]
    %v445 = vld [vmem:[#allocation7 + $0x120] sm:$0xff]
    %v446 = vld [vmem:[#allocation7 + $0x128] sm:$0xff]
    %v447 = vld [vmem:[#allocation7 + $0x130] sm:$0xff]
    %v448 = vld [vmem:[#allocation7 + $0x138] sm:$0xff]
    %v449 = vld [vmem:[#allocation7 + $0x140] sm:$0xff]
    %v450 = vld [vmem:[#allocation7 + $0x148] sm:$0xff]
    %v451 = vld [vmem:[#allocation7 + $0x150] sm:$0xff]
    %v452 = vld [vmem:[#allocation7 + $0x158] sm:$0xff]
    %v453 = vld [vmem:[#allocation7 + $0x160] sm:$0xff]
    %v454 = vld [vmem:[#allocation7 + $0x168] sm:$0xff]
    %v455 = vld [vmem:[#allocation7 + $0x170] sm:$0xff]
    %v456 = vld [vmem:[#allocation7 + $0x178] sm:$0xff]
    %457 = vmatprep.subr.mxu0 %v455
    %458 = vmatpush1.msra.mxu0 %v454
    %459 = vmatprep.subr.mxu0 %v452
    %460 = vmatpush1.msra.mxu0 %v451
    %461 = vmatprep.subr.mxu0 %v449
    %462 = vmatpush1.msra.mxu0 %v448
    %463 = vmatprep.subr.mxu0 %v446
    %464 = vmatpush1.msra.mxu0 %v445
    %465 = vmatprep.subr.mxu0 %v443
    %466 = vmatpush1.msra.mxu0 %v442
    %467 = vmatprep.subr.mxu0 %v440
    %468 = vmatpush1.msra.mxu0 %v439
    %469 = vmatprep.subr.mxu0 %v437
    %470 = vmatpush1.msra.mxu0 %v436
    %471 = vmatprep.subr.mxu0 %v434
    %472 = vmatpush1.msra.mxu0 %v433
    %473 = vmatprep.subr.mxu0 %v431
    %474 = vmatpush1.msra.mxu0 %v430
    %475 = vmatprep.subr.mxu0 %v428
    %476 = vmatpush1.msra.mxu0 %v427
    %477 = vmatprep.subr.mxu0 %v425
    %478 = vmatpush1.msra.mxu0 %v424
    %479 = vmatprep.subr.mxu0 %v422
    %480 = vmatpush1.msra.mxu0 %v421
    %481 = vmatprep.subr.mxu0 %v419
    %482 = vmatpush1.msra.mxu0 %v418
    %483 = vmatprep.subr.mxu0 %v416
    %484 = vmatpush1.msra.mxu0 %v415
    %485 = vmatprep.subr.mxu0 %v413
    %486 = vmatpush1.msra.mxu0 %v412
    %487 = vmatprep.subr.mxu0 %v410
    %488 = vmatpush1.msra.mxu0 %v409
    %489 = vmatprep.subr.mxu0 0.0
    %490 = vmatpush2.msra.mxu0 0.0
    %491 = vmatprep.subr.mxu0 0.0
    %492 = vmatpush2.msra.mxu0 0.0
    %493 = vmatprep.subr.mxu0 0.0
    %494 = vmatpush2.msra.mxu0 0.0
    %495 = vmatprep.subr.mxu0 0.0
    %496 = vmatpush2.msra.mxu0 0.0
    %497 = vmatprep.subr.mxu0 0.0
    %498 = vmatpush2.msra.mxu0 0.0
    %499 = vmatprep.subr.mxu0 0.0
    %500 = vmatpush2.msra.mxu0 0.0
    %501 = vmatprep.subr.mxu0 0.0
    %502 = vmatpush2.msra.mxu0 0.0
    %503 = vmatprep.subr.mxu0 0.0
    %504 = vmatpush2.msra.mxu0 0.0
    %505 = vmatprep.subr.mxu0 0.0
    %506 = vmatpush2.msra.mxu0 0.0
    %507 = vmatprep.subr.mxu0 0.0
    %508 = vmatpush2.msra.mxu0 0.0
    %509 = vmatprep.subr.mxu0 0.0
    %510 = vmatpush2.msra.mxu0 0.0
    %511 = vmatprep.subr.mxu0 0.0
    %512 = vmatpush2.msra.mxu0 0.0
    %513 = vmatprep.subr.mxu0 0.0
    %514 = vmatpush2.msra.mxu0 0.0
    %515 = vmatprep.subr.mxu0 0.0
    %516 = vmatpush2.msra.mxu0 0.0
    %517 = vmatprep.subr.mxu0 0.0
    %518 = vmatpush2.msra.mxu0 0.0
    %519 = vmatprep.subr.mxu0 0.0
    %520 = vmatpush2.msra.mxu0 0.0
    %521 = vmatprep.mubr.f32.mxu0 0.0
    %522 = vmatmul.mubr.f32.gmra.mxu0 %v128
    %v523 = vpop.f32.mrf.mxu0
    %v524 = vadd.f32 %v219, %v523
    %v525 = vpop.f32.mrf.mxu0
    %v526 = vadd.f32 %v310, %v525
    %527 = vmatprep.mubr.f32.mxu0 0.0
    %528 = vmatmul.mubr.f32.gmra.mxu0 %v129
    %v529 = vpop.f32.mrf.mxu0
    %v530 = vadd.f32 %v224, %v529
    %v531 = vpop.f32.mrf.mxu0
    %v532 = vadd.f32 %v315, %v531
    %533 = vdwg.mxu0
    %534 = vmatprep.subr.mxu0 0.0
    %535 = vmatpush1.msra.mxu0 %v456
    %536 = vmatprep.subr.mxu0 0.0
    %537 = vmatpush1.msra.mxu0 %v453
    %538 = vmatprep.subr.mxu0 0.0
    %539 = vmatpush1.msra.mxu0 %v450
    %540 = vmatprep.subr.mxu0 0.0
    %541 = vmatpush1.msra.mxu0 %v447
    %542 = vmatprep.subr.mxu0 0.0
    %543 = vmatpush1.msra.mxu0 %v444
    %544 = vmatprep.subr.mxu0 0.0
    %545 = vmatpush1.msra.mxu0 %v441
    %546 = vmatprep.subr.mxu0 0.0
    %547 = vmatpush1.msra.mxu0 %v438
    %548 = vmatprep.subr.mxu0 0.0
    %549 = vmatpush1.msra.mxu0 %v435
    %550 = vmatprep.subr.mxu0 0.0
    %551 = vmatpush1.msra.mxu0 %v432
    %552 = vmatprep.subr.mxu0 0.0
    %553 = vmatpush1.msra.mxu0 %v429
    %554 = vmatprep.subr.mxu0 0.0
    %555 = vmatpush1.msra.mxu0 %v426
    %556 = vmatprep.subr.mxu0 0.0
    %557 = vmatpush1.msra.mxu0 %v423
    %558 = vmatprep.subr.mxu0 0.0
    %559 = vmatpush1.msra.mxu0 %v420
    %560 = vmatprep.subr.mxu0 0.0
    %561 = vmatpush1.msra.mxu0 %v417
    %562 = vmatprep.subr.mxu0 0.0
    %563 = vmatpush1.msra.mxu0 %v414
    %564 = vmatprep.subr.mxu0 0.0
    %565 = vmatpush1.msra.mxu0 %v411
    %566 = vmatprep.subr.mxu0 0.0
    %567 = vmatpush2.msra.mxu0 0.0
    %568 = vmatprep.subr.mxu0 0.0
    %569 = vmatpush2.msra.mxu0 0.0
    %570 = vmatprep.subr.mxu0 0.0
    %571 = vmatpush2.msra.mxu0 0.0
    %572 = vmatprep.subr.mxu0 0.0
    %573 = vmatpush2.msra.mxu0 0.0
    %574 = vmatprep.subr.mxu0 0.0
    %575 = vmatpush2.msra.mxu0 0.0
    %576 = vmatprep.subr.mxu0 0.0
    %577 = vmatpush2.msra.mxu0 0.0
    %578 = vmatprep.subr.mxu0 0.0
    %579 = vmatpush2.msra.mxu0 0.0
    %580 = vmatprep.subr.mxu0 0.0
    %581 = vmatpush2.msra.mxu0 0.0
    %582 = vmatprep.subr.mxu0 0.0
    %583 = vmatpush2.msra.mxu0 0.0
    %584 = vmatprep.subr.mxu0 0.0
    %585 = vmatpush2.msra.mxu0 0.0
    %586 = vmatprep.subr.mxu0 0.0
    %587 = vmatpush2.msra.mxu0 0.0
    %588 = vmatprep.subr.mxu0 0.0
    %589 = vmatpush2.msra.mxu0 0.0
    %590 = vmatprep.subr.mxu0 0.0
    %591 = vmatpush2.msra.mxu0 0.0
    %592 = vmatprep.subr.mxu0 0.0
    %593 = vmatpush2.msra.mxu0 0.0
    %594 = vmatprep.subr.mxu0 0.0
    %595 = vmatpush2.msra.mxu0 0.0
    %596 = vmatprep.subr.mxu0 0.0
    %597 = vmatpush2.msra.mxu0 0.0
    %598 = vmatprep.mubr.f32.mxu0 0.0
    %599 = vmatmul.mubr.f32.gmra.mxu0 %v128
    %v600 = vpop.f32.mrf.mxu0
    %v601 = vadd.f32 %v401, %v600
    %v602 = vpop.f32.mrf.mxu0
    %603 = vmatprep.mubr.f32.mxu0 0.0
    %604 = vmatmul.mubr.f32.gmra.mxu0 %v129
    %v605 = vpop.f32.mrf.mxu0
    %v606 = vadd.f32 %v406, %v605
    %v607 = vpop.f32.mrf.mxu0
    %608 = vdwg.mxu0
    %v609 = vld [vmem:[%s6] sm:$0x7]
    %v611 = vlaneseq
    %v612 = vshrl.u32 %v611, 7
    %v613 = vsub.s32 0, %v612
    %v614 = vrot.slane %v609, %v613
    %v615 = vlaneseq
    %v616 = vshrl.u32 %v615, 7
    %v617 = vsub.s32 1, %v616
    %v618 = vrot.slane %v609, %v617
    %v619 = vlaneseq
    %v620 = vshrl.u32 %v619, 7
    %v621 = vsub.s32 2, %v620
    %v622 = vrot.slane %v609, %v621
    %v626 = vadd.f32 %v524, %v614
    %v627 = vadd.f32 %v526, %v618
    %v628 = vadd.f32 %v601, %v622
    %v629 = vadd.f32 %v530, %v614
    %v630 = vadd.f32 %v532, %v618
    %v631 = vadd.f32 %v606, %v622
    %v632 = vmul.f32 %v626, 0.5
    %v633 = vmul.f32 %v627, 0.5
    %v634 = vmul.f32 %v628, 0.5
    %v635 = vmul.f32 %v629, 0.5
    %v636 = vmul.f32 %v630, 0.5
    %v637 = vmul.f32 %v631, 0.5
    %v638 = vmul.f32 %v626, 0.70710677
    %v639 = vmul.f32 %v627, 0.70710677
    %v640 = vmul.f32 %v628, 0.70710677
    %v641 = vmul.f32 %v629, 0.70710677
    %v642 = vmul.f32 %v630, 0.70710677
    %v643 = vmul.f32 %v631, 0.70710677
    %v644 = verf.f32.pop %v638
    %v645 = verf.f32.pop %v639
    %v646 = verf.f32.pop %v640
    %v647 = verf.f32.pop %v641
    %v648 = verf.f32.pop %v642
    %v649 = verf.f32.pop %v643
    %v650 = vadd.f32 %v644, 1.0
    %v651 = vadd.f32 %v645, 1.0
    %v652 = vadd.f32 %v646, 1.0
    %v653 = vadd.f32 %v647, 1.0
    %v654 = vadd.f32 %v648, 1.0
    %v655 = vadd.f32 %v649, 1.0
    %v656 = vmul.f32 %v632, %v650
    %v657 = vmul.f32 %v633, %v651
    %v658 = vmul.f32 %v634, %v652
    %v659 = vmul.f32 %v635, %v653
    %v660 = vmul.f32 %v636, %v654
    %v661 = vmul.f32 %v637, %v655
    %v662 = vld [vmem:[#allocation13] sm:$0xff]
    %v663 = vld [vmem:[#allocation13 + $0x8] sm:$0xff]
    %v664 = vld [vmem:[#allocation13 + $0x10] sm:$0xff]
    %v665 = vld [vmem:[#allocation13 + $0x18] sm:$0xff]
    %v666 = vld [vmem:[#allocation13 + $0x20] sm:$0xff]
    %v667 = vld [vmem:[#allocation13 + $0x28] sm:$0xff]
    %v668 = vld [vmem:[#allocation13 + $0x30] sm:$0xff]
    %v669 = vld [vmem:[#allocation13 + $0x38] sm:$0xff]
    %v670 = vld [vmem:[#allocation13 + $0x40] sm:$0xff]
    %v671 = vld [vmem:[#allocation13 + $0x48] sm:$0xff]
    %v672 = vld [vmem:[#allocation13 + $0x50] sm:$0xff]
    %v673 = vld [vmem:[#allocation13 + $0x58] sm:$0xff]
    %v674 = vld [vmem:[#allocation13 + $0x60] sm:$0xff]
    %v675 = vld [vmem:[#allocation13 + $0x68] sm:$0xff]
    %v676 = vld [vmem:[#allocation13 + $0x70] sm:$0xff]
    %v677 = vld [vmem:[#allocation13 + $0x78] sm:$0xff]
    %v678 = vld [vmem:[#allocation13 + $0x80] sm:$0xff]
    %v679 = vld [vmem:[#allocation13 + $0x88] sm:$0xff]
    %v680 = vld [vmem:[#allocation13 + $0x90] sm:$0xff]
    %v681 = vld [vmem:[#allocation13 + $0x98] sm:$0xff]
    %v682 = vld [vmem:[#allocation13 + $0xa0] sm:$0xff]
    %v683 = vld [vmem:[#allocation13 + $0xa8] sm:$0xff]
    %v684 = vld [vmem:[#allocation13 + $0xb0] sm:$0xff]
    %v685 = vld [vmem:[#allocation13 + $0xb8] sm:$0xff]
    %v686 = vld [vmem:[#allocation13 + $0xc0] sm:$0xff]
    %v687 = vld [vmem:[#allocation13 + $0xc8] sm:$0xff]
    %v688 = vld [vmem:[#allocation13 + $0xd0] sm:$0xff]
    %v689 = vld [vmem:[#allocation13 + $0xd8] sm:$0xff]
    %v690 = vld [vmem:[#allocation13 + $0xe0] sm:$0xff]
    %v691 = vld [vmem:[#allocation13 + $0xe8] sm:$0xff]
    %v692 = vld [vmem:[#allocation13 + $0xf0] sm:$0xff]
    %v693 = vld [vmem:[#allocation13 + $0xf8] sm:$0xff]
    %v694 = vld [vmem:[#allocation13 + $0x100] sm:$0xff]
    %v695 = vld [vmem:[#allocation13 + $0x108] sm:$0xff]
    %v696 = vld [vmem:[#allocation13 + $0x110] sm:$0xff]
    %v697 = vld [vmem:[#allocation13 + $0x118] sm:$0xff]
    %v698 = vld [vmem:[#allocation13 + $0x120] sm:$0xff]
    %v699 = vld [vmem:[#allocation13 + $0x128] sm:$0xff]
    %v700 = vld [vmem:[#allocation13 + $0x130] sm:$0xff]
    %v701 = vld [vmem:[#allocation13 + $0x138] sm:$0xff]
    %v702 = vld [vmem:[#allocation13 + $0x140] sm:$0xff]
    %v703 = vld [vmem:[#allocation13 + $0x148] sm:$0xff]
    %v704 = vld [vmem:[#allocation13 + $0x150] sm:$0xff]
    %v705 = vld [vmem:[#allocation13 + $0x158] sm:$0xff]
    %v706 = vld [vmem:[#allocation13 + $0x160] sm:$0xff]
    %v707 = vld [vmem:[#allocation13 + $0x168] sm:$0xff]
    %v708 = vld [vmem:[#allocation13 + $0x170] sm:$0xff]
    %v709 = vld [vmem:[#allocation13 + $0x178] sm:$0xff]
    %v710 = vld [vmem:[%s8] sm:$0x1]
    %v712 = vlaneseq
    %v713 = vshrl.u32 %v712, 7
    %v714 = vsub.s32 0, %v713
    %v715 = vrot.slane %v710, %v714
    %717 = vmatprep.subr.mxu0 0.0
    %718 = vmatpush1.msra.mxu0 %v677
    %719 = vmatprep.subr.mxu0 0.0
    %720 = vmatpush1.msra.mxu0 %v676
    %721 = vmatprep.subr.mxu0 0.0
    %722 = vmatpush1.msra.mxu0 %v675
    %723 = vmatprep.subr.mxu0 0.0
    %724 = vmatpush1.msra.mxu0 %v674
    %725 = vmatprep.subr.mxu0 0.0
    %726 = vmatpush1.msra.mxu0 %v673
    %727 = vmatprep.subr.mxu0 0.0
    %728 = vmatpush1.msra.mxu0 %v672
    %729 = vmatprep.subr.mxu0 0.0
    %730 = vmatpush1.msra.mxu0 %v671
    %731 = vmatprep.subr.mxu0 0.0
    %732 = vmatpush1.msra.mxu0 %v670
    %733 = vmatprep.subr.mxu0 0.0
    %734 = vmatpush1.msra.mxu0 %v669
    %735 = vmatprep.subr.mxu0 0.0
    %736 = vmatpush1.msra.mxu0 %v668
    %737 = vmatprep.subr.mxu0 0.0
    %738 = vmatpush1.msra.mxu0 %v667
    %739 = vmatprep.subr.mxu0 0.0
    %740 = vmatpush1.msra.mxu0 %v666
    %741 = vmatprep.subr.mxu0 0.0
    %742 = vmatpush1.msra.mxu0 %v665
    %743 = vmatprep.subr.mxu0 0.0
    %744 = vmatpush1.msra.mxu0 %v664
    %745 = vmatprep.subr.mxu0 0.0
    %746 = vmatpush1.msra.mxu0 %v663
    %747 = vmatprep.subr.mxu0 0.0
    %748 = vmatpush1.msra.mxu0 %v662
    %749 = vmatprep.subr.mxu0 0.0
    %750 = vmatpush2.msra.mxu0 %v693
    %751 = vmatprep.subr.mxu0 0.0
    %752 = vmatpush2.msra.mxu0 %v692
    %753 = vmatprep.subr.mxu0 0.0
    %754 = vmatpush2.msra.mxu0 %v691
    %755 = vmatprep.subr.mxu0 0.0
    %756 = vmatpush2.msra.mxu0 %v690
    %757 = vmatprep.subr.mxu0 0.0
    %758 = vmatpush2.msra.mxu0 %v689
    %759 = vmatprep.subr.mxu0 0.0
    %760 = vmatpush2.msra.mxu0 %v688
    %761 = vmatprep.subr.mxu0 0.0
    %762 = vmatpush2.msra.mxu0 %v687
    %763 = vmatprep.subr.mxu0 0.0
    %764 = vmatpush2.msra.mxu0 %v686
    %765 = vmatprep.subr.mxu0 0.0
    %766 = vmatpush2.msra.mxu0 %v685
    %767 = vmatprep.subr.mxu0 0.0
    %768 = vmatpush2.msra.mxu0 %v684
    %769 = vmatprep.subr.mxu0 0.0
    %770 = vmatpush2.msra.mxu0 %v683
    %771 = vmatprep.subr.mxu0 0.0
    %772 = vmatpush2.msra.mxu0 %v682
    %773 = vmatprep.subr.mxu0 0.0
    %774 = vmatpush2.msra.mxu0 %v681
    %775 = vmatprep.subr.mxu0 0.0
    %776 = vmatpush2.msra.mxu0 %v680
    %777 = vmatprep.subr.mxu0 0.0
    %778 = vmatpush2.msra.mxu0 %v679
    %779 = vmatprep.subr.mxu0 0.0
    %780 = vmatpush2.msra.mxu0 %v678
    %781 = vmatprep.mubr.f32.mxu0 %v657
    %782 = vmatmul.mubr.f32.gmra.mxu0 %v656
    %v783 = vpop.f32.mrf.mxu0
    %v784 = vadd.f32 %v715, %v783
    %v785 = vpop.f32.mrf.mxu0
    %786 = vmatprep.mubr.f32.mxu0 %v660
    %787 = vmatmul.mubr.f32.gmra.mxu0 %v659
    %v788 = vpop.f32.mrf.mxu0
    %v789 = vadd.f32 %v715, %v788
    %v790 = vpop.f32.mrf.mxu0
    %791 = vdwg.mxu0
    %792 = vmatprep.subr.mxu0 0.0
    %793 = vmatpush1.msra.mxu0 %v709
    %794 = vmatprep.subr.mxu0 0.0
    %795 = vmatpush1.msra.mxu0 %v708
    %796 = vmatprep.subr.mxu0 0.0
    %797 = vmatpush1.msra.mxu0 %v707
    %798 = vmatprep.subr.mxu0 0.0
    %799 = vmatpush1.msra.mxu0 %v706
    %800 = vmatprep.subr.mxu0 0.0
    %801 = vmatpush1.msra.mxu0 %v705
    %802 = vmatprep.subr.mxu0 0.0
    %803 = vmatpush1.msra.mxu0 %v704
    %804 = vmatprep.subr.mxu0 0.0
    %805 = vmatpush1.msra.mxu0 %v703
    %806 = vmatprep.subr.mxu0 0.0
    %807 = vmatpush1.msra.mxu0 %v702
    %808 = vmatprep.subr.mxu0 0.0
    %809 = vmatpush1.msra.mxu0 %v701
    %810 = vmatprep.subr.mxu0 0.0
    %811 = vmatpush1.msra.mxu0 %v700
    %812 = vmatprep.subr.mxu0 0.0
    %813 = vmatpush1.msra.mxu0 %v699
    %814 = vmatprep.subr.mxu0 0.0
    %815 = vmatpush1.msra.mxu0 %v698
    %816 = vmatprep.subr.mxu0 0.0
    %817 = vmatpush1.msra.mxu0 %v697
    %818 = vmatprep.subr.mxu0 0.0
    %819 = vmatpush1.msra.mxu0 %v696
    %820 = vmatprep.subr.mxu0 0.0
    %821 = vmatpush1.msra.mxu0 %v695
    %822 = vmatprep.subr.mxu0 0.0
    %823 = vmatpush1.msra.mxu0 %v694
    %824 = vmatprep.subr.mxu0 0.0
    %825 = vmatpush2.msra.mxu0 0.0
    %826 = vmatprep.subr.mxu0 0.0
    %827 = vmatpush2.msra.mxu0 0.0
    %828 = vmatprep.subr.mxu0 0.0
    %829 = vmatpush2.msra.mxu0 0.0
    %830 = vmatprep.subr.mxu0 0.0
    %831 = vmatpush2.msra.mxu0 0.0
    %832 = vmatprep.subr.mxu0 0.0
    %833 = vmatpush2.msra.mxu0 0.0
    %834 = vmatprep.subr.mxu0 0.0
    %835 = vmatpush2.msra.mxu0 0.0
    %836 = vmatprep.subr.mxu0 0.0
    %837 = vmatpush2.msra.mxu0 0.0
    %838 = vmatprep.subr.mxu0 0.0
    %839 = vmatpush2.msra.mxu0 0.0
    %840 = vmatprep.subr.mxu0 0.0
    %841 = vmatpush2.msra.mxu0 0.0
    %842 = vmatprep.subr.mxu0 0.0
    %843 = vmatpush2.msra.mxu0 0.0
    %844 = vmatprep.subr.mxu0 0.0
    %845 = vmatpush2.msra.mxu0 0.0
    %846 = vmatprep.subr.mxu0 0.0
    %847 = vmatpush2.msra.mxu0 0.0
    %848 = vmatprep.subr.mxu0 0.0
    %849 = vmatpush2.msra.mxu0 0.0
    %850 = vmatprep.subr.mxu0 0.0
    %851 = vmatpush2.msra.mxu0 0.0
    %852 = vmatprep.subr.mxu0 0.0
    %853 = vmatpush2.msra.mxu0 0.0
    %854 = vmatprep.subr.mxu0 0.0
    %855 = vmatpush2.msra.mxu0 0.0
    %856 = vmatprep.mubr.f32.mxu0 0.0
    %857 = vmatmul.mubr.f32.gmra.mxu0 %v658
    %v858 = vpop.f32.mrf.mxu0
    %v859 = vadd.f32 %v784, %v858
    %v860 = vpop.f32.mrf.mxu0
    %861 = vmatprep.mubr.f32.mxu0 0.0
    %862 = vmatmul.mubr.f32.gmra.mxu0 %v661
    %v863 = vpop.f32.mrf.mxu0
    %v864 = vadd.f32 %v789, %v863
    %v865 = vpop.f32.mrf.mxu0
    %866 = vdwg.mxu0
    %v867 = vmul.f32 %v859, 0.5
    %v868 = vmul.f32 %v864, 0.5
    %v869 = vmul.f32 %v859, 0.70710677
    %v870 = vmul.f32 %v864, 0.70710677
    %v871 = verf.f32.pop %v869
    %v872 = verf.f32.pop %v870
    %v873 = vadd.f32 %v871, 1.0
    %v874 = vadd.f32 %v872, 1.0
    %v875 = vmul.f32 %v867, %v873
    %v876 = vmul.f32 %v868, %v874
    %877 = vst [vmem:[#allocation14] sm:$0xff] %v875
    %878 = vst [vmem:[#allocation14 + $0x8] sm:$0xff] %v876
    // Predicated region
    $region66: #{tpu_custom_call.1} parent=1 // pred_check
      _
    $region67: #{tpu_custom_call.1} parent=1 // pred_check_branch
      %880 = sbr.rel (0) target = $region69
    $region68: #{tpu_custom_call.1} parent=1 // pred_region
      %s882 = ssub.s32 256, 256
      %883 = vsyncadd [#allocation4], %s882
      %s884 = sshll.u32 [#allocation14], 4
      %s885 = int_to_ptr.vmem [resolvable:$true] %s884
      %890 = dma.vmem_to_hbm [thread:$0]  %s885, 256, %s9, [#allocation4], 128, 128, 8
    $region69: #{tpu_custom_call.1} parent=1 // pred_fallthru
      _
    // Predicated region
    $region70: #{tpu_custom_call.1} parent=1 // pred_check
      _
    $region71: #{tpu_custom_call.1} parent=1 // pred_check_branch
      %892 = sbr.rel (0) target = $region73
    $region72: #{tpu_custom_call.1} parent=1 // pred_region
      %893 = dma.done [#allocation4], 256
    $region73: #{tpu_custom_call.1} parent=1 // pred_fallthru
      _
    %894 = vsyncpa [#allocation3], 1
    %895 = vsyncpa [#allocation6], 1
    %896 = vsyncpa [#allocation9], 1
    %897 = vsyncpa [#allocation12], 1
    %898 = vsyncpa [#allocation4], 1

</llo_original>
